<compile_context>
chip_gen: v7x
topology: tpu7x:2x2x1
jax: 0.10.0
libtpu: 0.0.40
codegen_flags: <defaults>
</compile_context>

<pallas_src>
import functools

import jax
import jax.numpy as jnp
from jax.experimental import pallas as pl
from jax.experimental.pallas import tpu as pltpu


_NEG_BIG = -1000000000.0  # same constant as the PyTorch module


# --------------------------------------------------------------------------- #
# Kernels
# --------------------------------------------------------------------------- #
def _make_tile_kernel(tm, tn, exact):
    """Kernel over a (b_tile, tm, tn) block.  Grid = (bh_tile, row_tile, col_tile)."""

    def kernel(w_ref, o_ref):
        r0 = pl.program_id(1) * tm
        c0 = pl.program_id(2) * tn
        row = r0 + jax.lax.broadcasted_iota(jnp.int32, (tm, tn), 0)
        col = c0 + jax.lax.broadcasted_iota(jnp.int32, (tm, tn), 1)
        keep = (row >= col)[None, :, :]          # tril; broadcasts over b_tile
        w = w_ref[...]
        neg = jnp.asarray(_NEG_BIG, w_ref.dtype)
        if exact:
            # Exact PyTorch arithmetic (NaN/Inf in masked slots propagate).
            b = keep.astype(w_ref.dtype)
            one = jnp.asarray(1.0, w_ref.dtype)
            o_ref[...] = w * b + neg * (one - b)
        else:
            o_ref[...] = jnp.where(keep, w, neg)

    return kernel


def _make_flat_kernel(exact):
    """Tiny-plane kernel: last two dims flattened to one lane-dense axis.

    Args: b_ref (1, n_ctx*n_ctx) 0/1 tril mask (resident), w_ref / o_ref
    (bh_tile, n_ctx*n_ctx).
    """

    def kernel(b_ref, w_ref, o_ref):
        w = w_ref[...]
        b = b_ref[...]
        neg = jnp.asarray(_NEG_BIG, w_ref.dtype)
        if exact:
            one = jnp.asarray(1.0, w_ref.dtype)
            o_ref[...] = w * b + neg * (one - b)
        else:
            o_ref[...] = jnp.where(b != 0, w, neg)

    return kernel


# --------------------------------------------------------------------------- #
# Tiling helpers
# --------------------------------------------------------------------------- #
def _default_block_budget_bytes():
    """Per-block byte budget.  4 live buffers (double-buffered in+out) must fit
    the scoped-VMEM default: 16 MiB on v5e, 32 MiB on v6e/v7x."""
    try:
        kind = jax.devices()[0].device_kind.lower()
    except Exception:  # pragma: no cover
        kind = ""
    if ("v6" in kind) or ("v7" in kind):
        return 6 * 1024 * 1024     # 4 x 6 MiB = 24 MiB  < 32 MiB scoped default
    return 3 * 1024 * 1024         # 4 x 3 MiB = 12 MiB  < 16 MiB (v5e / unknown)


def _divisors(n):
    return [d for d in range(1, n + 1) if n % d == 0]


def _choose_bh_tile_flat(bh, row_bytes, budget):
    """Tiny-plane path: pick rows-per-block (multiple of 8, or full bh)."""
    valid = [d for d in _divisors(bh)
             if (d % 8 == 0 or d == bh) and d * row_bytes <= budget]
    if not valid:
        return None
    split = [d for d in valid if bh // d >= 2]   # prefer >=2 steps (megacore)
    return max(split) if split else max(valid)


def _choose_tiles(bh, n_ctx, itemsize, budget, skip_reads):
    """Return (b_tile, tm, tn) for the 3-D path, or None -> XLA fallback."""
    plane = n_ctx * n_ctx * itemsize
    tileable = (n_ctx % 8 == 0)

    # Only worth tiling-for-skip when we can get >=2 column tiles of >=128
    # lanes and the plane is big enough to amortise per-step overhead.
    want_col_tiles = (skip_reads and tileable and n_ctx % 256 == 0
                      and plane >= (1 << 20))

    if plane <= budget and not want_col_tiles:
        # Whole (n_ctx, n_ctx) plane per block; pack heads to amortise the
        # ~0.35us/step overhead, but keep >=2 grid steps when bh allows
        # (v7x megacore).
        b_tile = max(1, min(bh, budget // plane))
        while bh % b_tile:
            b_tile -= 1
        if b_tile == bh and bh >= 2:
            b_tile = bh // 2
            while bh % b_tile:
                b_tile -= 1
        return b_tile, n_ctx, n_ctx

    if not tileable:
        return None                      # odd large n_ctx -> plain XLA fallback

    # ---- lane (last-dim) tile ----
    tn = None
    if want_col_tiles:
        for cand in (512, 256, 128):     # >=2 column tiles => skippable reads
            if n_ctx % cand == 0 and n_ctx // cand >= 2 and cand * 8 * itemsize <= budget:
                tn = cand
                break
    if tn is None:
        if n_ctx % 128 == 0:
            for cand in (2048, 1024, 512, 256, 128):
                if n_ctx % cand == 0 and cand * 8 * itemsize <= budget:
                    tn = cand
                    break
        elif n_ctx * 8 * itemsize <= budget:
            tn = n_ctx                   # odd lane dim, full width (allowed)
    if tn is None:
        return None

    # ---- sublane (second-to-last) tile ----
    max_tm = max(8, budget // (tn * itemsize))
    tm_cap = n_ctx if bh >= 2 else max(8, n_ctx // 2)   # keep >=2 parallel steps
    tm = None
    for cap in (tm_cap, n_ctx):
        for cand in (2048, 1024, 512, 256, 128, 64, 32, 16, 8):
            if cand <= max_tm and cand <= cap and n_ctx % cand == 0:
                tm = cand
                break
        if tm is not None:
            break
    if tm is None:
        return None
    return 1, tm, tn


def _xla_mask(w, exact):
    """Plain-XLA fallback for shapes we refuse to tile (odd huge n_ctx)."""
    n = w.shape[-1]
    row = jax.lax.broadcasted_iota(jnp.int32, (n, n), 0)
    col = jax.lax.broadcasted_iota(jnp.int32, (n, n), 1)
    keep = row >= col
    neg = jnp.asarray(_NEG_BIG, w.dtype)
    if exact:
        b = keep.astype(w.dtype)
        return w * b + neg * (jnp.asarray(1.0, w.dtype) - b)
    return jnp.where(keep, w, neg)


# --------------------------------------------------------------------------- #
# Public entry point
# --------------------------------------------------------------------------- #
def mask_forward(w, *, exact_masked_arith=False, in_place=False,
                 block_budget_bytes=None):
    """Causal mask: w * tril + (-1e9) * (1 - tril).

    w: (batch, heads, n_ctx, n_ctx)
    exact_masked_arith: reproduce PyTorch's w*b + (-1e9)*(1-b) exactly
        (NaN/Inf in masked slots propagate; disables the read-skip optimisation).
    in_place: alias output onto input.  Only saves HBM if the caller donates w
        (jax.jit donate_argnums); otherwise XLA inserts a defensive copy.
    """
    batch, heads, n_ctx, n_ctx2 = w.shape
    assert n_ctx == n_ctx2, "last two dims must both be n_ctx"
    bh = batch * heads
    itemsize = jnp.dtype(w.dtype).itemsize
    budget = block_budget_bytes or _default_block_budget_bytes()

    # ---------------- tiny planes: lane-dense flattened path ----------------
    if n_ctx < 128:
        n2 = n_ctx * n_ctx
        bh_tile = _choose_bh_tile_flat(bh, n2 * itemsize, budget)
        if bh_tile is None:
            return _xla_mask(w, exact_masked_arith)
        w2 = w.reshape(bh, n2)
        b_flat = jnp.tril(jnp.ones((n_ctx, n_ctx), w.dtype)).reshape(1, n2)
        out2 = pl.pallas_call(
            _make_flat_kernel(exact_masked_arith),
            out_shape=jax.ShapeDtypeStruct((bh, n2), w.dtype),
            grid=(bh // bh_tile,),
            in_specs=[pl.BlockSpec((1, n2), lambda i: (0, 0)),        # resident
                      pl.BlockSpec((bh_tile, n2), lambda i: (i, 0))],
            out_specs=pl.BlockSpec((bh_tile, n2), lambda i: (i, 0)),
            compiler_params=pltpu.CompilerParams(
                dimension_semantics=("parallel",)),
            input_output_aliases=({1: 0} if in_place else {}),
        )(b_flat, w2)
        return out2.reshape(batch, heads, n_ctx, n_ctx)

    # ---------------- general path: 3-D tiled plane ----------------
    tiles = _choose_tiles(bh, n_ctx, itemsize, budget,
                          skip_reads=not exact_masked_arith)
    if tiles is None:
        # TODO(synk): pad-to-tile path for odd huge n_ctx instead of XLA.
        return _xla_mask(w, exact_masked_arith)

    b_tile, tm, tn = tiles
    grid = (bh // b_tile, n_ctx // tm, n_ctx // tn)
    w3 = w.reshape(bh, n_ctx, n_ctx)

    out_spec = pl.BlockSpec((b_tile, tm, tn), lambda i, r, c: (i, r, c))
    if exact_masked_arith:
        in_spec = pl.BlockSpec((b_tile, tm, tn), lambda i, r, c: (i, r, c))
    else:
        # Skip HBM reads of tiles strictly above the diagonal: clamp the input
        # column block index to the diagonal-straddling tile of this row.  The
        # repeated (identical) block index makes Pallas elide the refetch, and
        # jnp.where never uses the stale buffer contents for those tiles.
        def in_map(i, r, c):
            c_diag = ((r + 1) * tm - 1) // tn
            return (i, r, jnp.minimum(c, c_diag))
        in_spec = pl.BlockSpec((b_tile, tm, tn), in_map)

    out3 = pl.pallas_call(
        _make_tile_kernel(tm, tn, exact_masked_arith),
        out_shape=jax.ShapeDtypeStruct((bh, n_ctx, n_ctx), w.dtype),
        grid=grid,
        in_specs=[in_spec],
        out_specs=out_spec,
        compiler_params=pltpu.CompilerParams(
            # column axis sequential so the refetch-elision trick applies;
            # leading axes parallel for v7x megacore sharding.
            dimension_semantics=("parallel", "parallel", "arbitrary")),
        input_output_aliases=({0: 0} if in_place else {}),
    )(w3)
    return out3.reshape(batch, heads, n_ctx, n_ctx)


# --------------------------------------------------------------------------- #
# Reference + harness
# --------------------------------------------------------------------------- #
def _reference(w):
    """Pure-JAX mirror of the PyTorch forward."""
    n = w.shape[-1]
    b = jnp.tril(jnp.ones((n, n), dtype=w.dtype))[None, None]
    return w * b + _NEG_BIG * (1.0 - b)


if __name__ == "__main__":
    key = jax.random.PRNGKey(0)
    k1, k2 = jax.random.split(key)

    # Case 1: tiny plane (n_ctx=16) -> lane-dense flattened path (both math modes).
    w1 = jax.random.normal(k1, (2, 4, 16, 16), dtype=jnp.float32)
    ref1 = _reference(w1)
    out1 = jax.block_until_ready(mask_forward(w1))
    assert out1.shape == w1.shape
    assert jnp.allclose(out1, ref1, atol=1e-6, rtol=1e-6)
    out1e = jax.block_until_ready(mask_forward(w1, exact_masked_arith=True))
    assert jnp.allclose(out1e, ref1, atol=1e-6, rtol=1e-6)

    # Case 2: larger plane with a forced-small block budget so the tiled path
    # (with above-diagonal read skipping) is exercised on any chip.
    w2 = jax.random.normal(k2, (1, 2, 512, 512), dtype=jnp.float32)
    ref2 = _reference(w2)
    out2 = jax.block_until_ready(
        mask_forward(w2, block_budget_bytes=256 * 1024))
    assert out2.shape == w2.shape
    assert jnp.allclose(out2, ref2, atol=1e-6, rtol=1e-6)

    # Case 3: donated in-place variant (production path for huge score tensors).
    f_inplace = jax.jit(
        functools.partial(mask_forward, in_place=True,
                          block_budget_bytes=256 * 1024),
        donate_argnums=0)
    out3 = jax.block_until_ready(f_inplace(w2))
    assert jnp.allclose(out3, ref2, atol=1e-6, rtol=1e-6)

    print("KERNEL_OK")
</pallas_src>

<mosaic_0001>
module attributes {stable_mosaic.version = 11 : i64} {
  func.func @kernel(%arg0: i32, %arg1: memref<1x256xf32, #tpu.memory_space<vmem>>, %arg2: memref<8x256xf32, #tpu.memory_space<vmem>>, %arg3: memref<8x256xf32, #tpu.memory_space<vmem>>) attributes {dimension_semantics = [#tpu.dimension_semantics<parallel>], iteration_bounds = array<i64: 1>, scalar_prefetch = 0 : i64, scratch_operands = 0 : i64, tpu.core_type = #tpu.core_type<tc>, window_params = [{pipeline_mode = #tpu.pipeline_mode<synchronous>, transform_indices = @transform_0, window_bounds = array<i64: 1, 256>}, {transform_indices = @transform_1, window_bounds = array<i64: 8, 256>}, {transform_indices = @transform_2, window_bounds = array<i64: 8, 256>}]} {
    %c0 = arith.constant 0 : index
    %c0_0 = arith.constant 0 : index
    %0 = vector.load %arg2[%c0, %c0_0] : memref<8x256xf32, #tpu.memory_space<vmem>>, vector<8x256xf32>
    %c0_1 = arith.constant 0 : index
    %c0_2 = arith.constant 0 : index
    %1 = vector.load %arg1[%c0_1, %c0_2] : memref<1x256xf32, #tpu.memory_space<vmem>>, vector<1x256xf32>
    %cst = arith.constant 0.000000e+00 : f32
    %2 = vector.broadcast %cst : f32 to vector<1x256xf32>
    %3 = arith.cmpf one, %1, %2 : vector<1x256xf32>
    %cst_3 = arith.constant -1.000000e+09 : f32
    %4 = vector.shape_cast %3 : vector<1x256xi1> to vector<1x256xi1>
    %5 = vector.broadcast %4 : vector<1x256xi1> to vector<8x256xi1>
    %6 = vector.broadcast %cst_3 : f32 to vector<8x256xf32>
    %7 = arith.select %5, %0, %6 : vector<8x256xi1>, vector<8x256xf32>
    %c0_4 = arith.constant 0 : index
    %c0_5 = arith.constant 0 : index
    %8 = vector.load %arg3[%c0_4, %c0_5] : memref<8x256xf32, #tpu.memory_space<vmem>>, vector<8x256xf32>
    tpu.vector_store %arg3[%c0_4, %c0_5], %7 {strides = array<i32>} : memref<8x256xf32, #tpu.memory_space<vmem>>, vector<8x256xf32>,
    return
  }
  func.func @transform_0(%arg0: i32) -> (i32, i32) {
    %c0_i32 = arith.constant 0 : i32
    %c0_i32_0 = arith.constant 0 : i32
    %c0_i32_1 = arith.constant 0 : i32
    return %c0_i32, %c0_i32_0 : i32, i32
  }
  func.func @transform_1(%arg0: i32) -> (i32, i32) {
    %c0_i32 = arith.constant 0 : i32
    %c0_i32_0 = arith.constant 0 : i32
    return %arg0, %c0_i32 : i32, i32
  }
  func.func @transform_2(%arg0: i32) -> (i32, i32) {
    %c0_i32 = arith.constant 0 : i32
    %c0_i32_0 = arith.constant 0 : i32
    return %arg0, %c0_i32 : i32, i32
  }
}

</mosaic_0001>

<llo_original>
// kernel: tpu_custom_call.1
$region0: #{tpu_custom_call.1}
  #allocation0 [shape = 'u32[]', space=smem, size = 0x4, offset = 0x4, fixed_abs, tag = 'smem constant byte address 0x4 - core index']
  #allocation1 [shape = 'u32[144,128]{1,0:T(1,128)}', space=vmem, size = 0x12000, scoped, tag = 'internal scratch']
  %s0 = inlined_call_operand.hbm [shape: f32[1,256], index: 0, kind: input, shape index: {}]
  %s1 = inlined_call_operand.hbm [shape: f32[8,256], index: 1, kind: input, shape index: {}]
  %s2 = inlined_call_operand.hbm [shape: f32[8,256], index: 2, kind: output, shape index: {}]
  %s3 = sld [smem:[#allocation0]]
  $region26: #{tpu_custom_call.1} parent=0
    _
  %s5 = ssub.s32 1, %s3
  %s6 = scalar_select 0, %s5, %s3
  $region1: #{tpu_custom_call.1} parent=0
    #allocation2 [shape = 'u8[1024]{0}', space=vmem, size = 0x400, scoped, tag = 'input window, operand 0, single buffered']
    #allocation3 [shape = 's32[1]{0}', space=sflag, size = 0x4, scoped, tag = 'scoped memory for tpu_custom_call.1']
    #allocation4 [shape = 's32[1]{0}', space=sflag, size = 0x4, scoped, tag = 'scoped memory for tpu_custom_call.1']
    #allocation5 [shape = 'u8[8192]{0}', space=vmem, size = 0x2000, scoped, tag = 'input window, operand 1, single buffered']
    #allocation6 [shape = 's32[1]{0}', space=sflag, size = 0x4, scoped, tag = 'scoped memory for tpu_custom_call.1']
    #allocation7 [shape = 'u8[8192]{0}', space=vmem, size = 0x2000, scoped, tag = 'output window, operand 0, single buffered']
    %7 = vsyncpa [#allocation3], 0
    %8 = vsyncpa [#allocation6], 0
    %9 = vsyncpa [#allocation4], 0
    // Predicated region
    $region2: #{tpu_custom_call.1} parent=1 // pred_check
      _
    $region3: #{tpu_custom_call.1} parent=1 // pred_check_branch
      %11 = sbr.rel (0) target = $region5
    $region4: #{tpu_custom_call.1} parent=1 // pred_region
      %s13 = ssub.s32 32, 32
      %14 = vsyncadd [#allocation3], %s13
      %s16 = sshll.u32 [#allocation2], 4
      %s17 = int_to_ptr.vmem [resolvable:$true] %s16
      %19 = dma.hbm_to_vmem [thread:$0]  %s0, 32, %s17, [#allocation3]
    $region5: #{tpu_custom_call.1} parent=1 // pred_fallthru
      _
    // Predicated region
    $region6: #{tpu_custom_call.1} parent=1 // pred_check
      _
    $region7: #{tpu_custom_call.1} parent=1 // pred_check_branch
      %21 = sbr.rel (0) target = $region9
    $region8: #{tpu_custom_call.1} parent=1 // pred_region
      %s23 = ssub.s32 256, 256
      %24 = vsyncadd [#allocation6], %s23
      %s26 = sshll.u32 [#allocation5], 4
      %s27 = int_to_ptr.vmem [resolvable:$true] %s26
      %29 = dma.hbm_to_vmem [thread:$0]  %s1, 256, %s27, [#allocation6]
    $region9: #{tpu_custom_call.1} parent=1 // pred_fallthru
      _
    // Predicated region
    $region10: #{tpu_custom_call.1} parent=1 // pred_check
      _
    $region11: #{tpu_custom_call.1} parent=1 // pred_check_branch
      %31 = sbr.rel (0) target = $region13
    $region12: #{tpu_custom_call.1} parent=1 // pred_region
      %32 = dma.done [#allocation3], 32
    $region13: #{tpu_custom_call.1} parent=1 // pred_fallthru
      _
    // Predicated region
    $region14: #{tpu_custom_call.1} parent=1 // pred_check
      _
    $region15: #{tpu_custom_call.1} parent=1 // pred_check_branch
      %34 = sbr.rel (0) target = $region17
    $region16: #{tpu_custom_call.1} parent=1 // pred_region
      %35 = dma.done [#allocation6], 256
    $region17: #{tpu_custom_call.1} parent=1 // pred_fallthru
      _
    %v36 = vld [vmem:[#allocation5] sm:$0xff]
    %v37 = vld [vmem:[#allocation5 + $0x8] sm:$0xff]
    %v38 = vld [vmem:[#allocation2] sm:$0x3]
    %vm39 = vcmp.ne.f32.partialorder %v38, 0.0
    %v40 = vsel %vm39, 1, 0
    %v41 = vlaneseq
    %v42 = vshrl.u32 %v41, 7
    %v43 = vsub.s32 0, %v42
    %v44 = vrot.slane %v40, %v43
    %v45 = vlaneseq
    %v46 = vshrl.u32 %v45, 7
    %v47 = vsub.s32 1, %v46
    %v48 = vrot.slane %v40, %v47
    %vm49 = vcmp.eq.s32.totalorder %v44, 1
    %vm50 = vcmp.eq.s32.totalorder %v48, 1
    %v51 = vsel %vm49, %v36, -1e+09
    %v52 = vsel %vm50, %v37, -1e+09
    %53 = vst [vmem:[#allocation7] sm:$0xff] %v51
    %54 = vst [vmem:[#allocation7 + $0x8] sm:$0xff] %v52
    // Predicated region
    $region18: #{tpu_custom_call.1} parent=1 // pred_check
      _
    $region19: #{tpu_custom_call.1} parent=1 // pred_check_branch
      %56 = sbr.rel (0) target = $region21
    $region20: #{tpu_custom_call.1} parent=1 // pred_region
      %s58 = ssub.s32 256, 256
      %59 = vsyncadd [#allocation4], %s58
      %s61 = sshll.u32 [#allocation7], 4
      %s62 = int_to_ptr.vmem [resolvable:$true] %s61
      %64 = dma.vmem_to_hbm [thread:$0]  %s62, 256, %s2, [#allocation4]
    $region21: #{tpu_custom_call.1} parent=1 // pred_fallthru
      _
    // Predicated region
    $region22: #{tpu_custom_call.1} parent=1 // pred_check
      _
    $region23: #{tpu_custom_call.1} parent=1 // pred_check_branch
      %66 = sbr.rel (0) target = $region25
    $region24: #{tpu_custom_call.1} parent=1 // pred_region
      %67 = dma.done [#allocation4], 256
    $region25: #{tpu_custom_call.1} parent=1 // pred_fallthru
      _
    %68 = vsyncpa [#allocation3], 1
    %69 = vsyncpa [#allocation6], 1
    %70 = vsyncpa [#allocation4], 1

</llo_original>
